<compile_context>
chip_gen: v7x
topology: tpu7x:2x2x1
jax: 0.10.0
libtpu: 0.0.40
codegen_flags: <defaults>
</compile_context>

<pallas_src>
import jax
import jax.numpy as jnp
from jax.experimental import pallas as pl
from jax.experimental.pallas import tpu as pltpu


def _deepnet_kernel(x_ref, p1_ref, wh_ref, bh_ref, wo_ref, bo_ref, o_ref):
    # x_ref:  (1, tile_b)        batch on the lane axis
    # p1_ref: (hidden, 2)        column 0 = w1, column 1 = b1
    # wh_ref: (4, hidden, hidden) layers 2..5 weights (out, in)
    # bh_ref: (4, hidden, 1)      layers 2..5 biases
    # wo_ref: (1, hidden)         output weight
    # bo_ref: (1, 1)              output bias
    # o_ref:  (1, tile_b)         lane-dense output
    x = x_ref[...]                       # (1, tile_b)
    p1 = p1_ref[...]                     # (hidden, 2)
    w1 = p1[:, 0:1]                      # (hidden, 1)
    b1 = p1[:, 1:2]                      # (hidden, 1)

    # Layer 1: K == 1 contraction -> pure VPU broadcast (outer product).
    h = jnp.tanh(w1 * x + b1)            # (hidden, tile_b)

    # Layers 2..5: MXU matmuls with lane-dense (hidden, tile_b) activations.
    for l in range(4):                   # static unroll (4 tiny iterations)
        z = jnp.dot(wh_ref[l], h, preferred_element_type=jnp.float32)
        h = jnp.tanh(z + bh_ref[l])      # bias (hidden,1) broadcasts over lanes

    # Output layer (also tanh, matching the reference module).
    z = jnp.dot(wo_ref[...], h, preferred_element_type=jnp.float32)  # (1, tile_b)
    o_ref[...] = jnp.tanh(z + bo_ref[...]).astype(o_ref.dtype)


def deepnet_forward(x, params, *, tile_b=128):
    """x: (B, 1) float32. params: torch-layout list of (w=(out,in), b=(out,))."""
    batch = x.shape[0]
    (w1, b1), (w2, b2), (w3, b3), (w4, b4), (w5, b5), (w6, b6) = params
    hidden = w1.shape[0]

    # ---- pack / collapse operands -------------------------------------------
    p1 = jnp.concatenate([w1, b1[:, None]], axis=1).astype(jnp.float32)  # (h, 2)
    wh = jnp.stack([w2, w3, w4, w5]).astype(jnp.float32)                 # (4,h,h)
    bh = jnp.stack([b2, b3, b4, b5])[:, :, None].astype(jnp.float32)     # (4,h,1)
    wo = w6.astype(jnp.float32)                                          # (1, h)
    bo = b6.reshape(1, 1).astype(jnp.float32)                            # (1, 1)

    # ---- lane-dense batch layout + padding to the tile ----------------------
    n_tiles = pl.cdiv(batch, tile_b)
    b_pad = n_tiles * tile_b
    x_t = jnp.pad(x.astype(jnp.float32).T, ((0, 0), (0, b_pad - batch)))  # (1, b_pad)

    const2 = lambda i: (0, 0)
    const3 = lambda i: (0, 0, 0)

    out = pl.pallas_call(
        _deepnet_kernel,
        out_shape=jax.ShapeDtypeStruct((1, b_pad), jnp.float32),
        grid=(n_tiles,),
        in_specs=[
            pl.BlockSpec((1, tile_b), lambda i: (0, i)),      # x tile per step
            pl.BlockSpec(p1.shape, const2),                   # resident params
            pl.BlockSpec(wh.shape, const3),
            pl.BlockSpec(bh.shape, const3),
            pl.BlockSpec(wo.shape, const2),
            pl.BlockSpec(bo.shape, const2),
        ],
        out_specs=pl.BlockSpec((1, tile_b), lambda i: (0, i)),
        compiler_params=pltpu.CompilerParams(
            dimension_semantics=("parallel",),                # 2-TC shard on v7x
        ),
    )(x_t, p1, wh, bh, wo, bo)

    return out[:, :batch].T               # back to (B, 1)


def init_params(key, hidden):
    """nn.Linear-style init in torch layout: w=(out,in), b=(out,)."""
    dims = [(hidden, 1), (hidden, hidden), (hidden, hidden),
            (hidden, hidden), (hidden, hidden), (1, hidden)]
    params = []
    for (fan_out, fan_in) in dims:
        key, kw, kb = jax.random.split(key, 3)
        bound = 1.0 / jnp.sqrt(jnp.float32(fan_in))
        w = jax.random.uniform(kw, (fan_out, fan_in), jnp.float32, -bound, bound)
        b = jax.random.uniform(kb, (fan_out,), jnp.float32, -bound, bound)
        params.append((w, b))
    return params


def deepnet_reference(x, params):
    h = x
    for w, b in params:
        h = jnp.tanh(h @ w.T + b)
    return h


if __name__ == "__main__":
    key = jax.random.PRNGKey(0)
    hidden = 32
    batch = 200     # non-multiple of tile_b: exercises the grid (2 steps) + padding

    kx, kp = jax.random.split(key)
    x = jax.random.uniform(kx, (batch, 1), jnp.float32, -1.0, 1.0)
    params = init_params(kp, hidden)

    out = deepnet_forward(x, params)
    out = jax.block_until_ready(out)

    ref = deepnet_reference(x, params)
    assert out.shape == (batch, 1)
    assert jnp.allclose(out, ref, atol=1e-5, rtol=1e-5)

    print("KERNEL_OK")
</pallas_src>

<mosaic_0001>
module attributes {stable_mosaic.version = 11 : i64} {
  func.func @_deepnet_kernel(%arg0: i32, %arg1: memref<1x128xf32, #tpu.memory_space<vmem>>, %arg2: memref<32x2xf32, #tpu.memory_space<vmem>>, %arg3: memref<4x32x32xf32, #tpu.memory_space<vmem>>, %arg4: memref<4x32x1xf32, #tpu.memory_space<vmem>>, %arg5: memref<1x32xf32, #tpu.memory_space<vmem>>, %arg6: memref<1x1xf32, #tpu.memory_space<vmem>>, %arg7: memref<1x128xf32, #tpu.memory_space<vmem>>) attributes {dimension_semantics = [#tpu.dimension_semantics<parallel>], iteration_bounds = array<i64: 2>, scalar_prefetch = 0 : i64, scratch_operands = 0 : i64, tpu.core_type = #tpu.core_type<tc>, window_params = [{transform_indices = @transform_0, window_bounds = array<i64: 1, 128>}, {pipeline_mode = #tpu.pipeline_mode<synchronous>, transform_indices = @transform_1, window_bounds = array<i64: 32, 2>}, {pipeline_mode = #tpu.pipeline_mode<synchronous>, transform_indices = @transform_2, window_bounds = array<i64: 4, 32, 32>}, {pipeline_mode = #tpu.pipeline_mode<synchronous>, transform_indices = @transform_3, window_bounds = array<i64: 4, 32, 1>}, {pipeline_mode = #tpu.pipeline_mode<synchronous>, transform_indices = @transform_4, window_bounds = array<i64: 1, 32>}, {pipeline_mode = #tpu.pipeline_mode<synchronous>, transform_indices = @transform_5, window_bounds = array<i64: 1, 1>}, {transform_indices = @transform_6, window_bounds = array<i64: 1, 128>}]} {
    %c0 = arith.constant 0 : index
    %c0_0 = arith.constant 0 : index
    %0 = vector.load %arg1[%c0, %c0_0] : memref<1x128xf32, #tpu.memory_space<vmem>>, vector<1x128xf32>
    %c0_1 = arith.constant 0 : index
    %c0_2 = arith.constant 0 : index
    %1 = vector.load %arg2[%c0_1, %c0_2] : memref<32x2xf32, #tpu.memory_space<vmem>>, vector<32x2xf32>
    %2 = vector.extract_strided_slice %1 {offsets = [0, 0], sizes = [32, 1], strides = [1, 1]} : vector<32x2xf32> to vector<32x1xf32>
    %3 = vector.extract_strided_slice %1 {offsets = [0, 1], sizes = [32, 1], strides = [1, 1]} : vector<32x2xf32> to vector<32x1xf32>
    %4 = vector.broadcast %2 : vector<32x1xf32> to vector<32x128xf32>
    %5 = vector.broadcast %0 : vector<1x128xf32> to vector<32x128xf32>
    %6 = arith.mulf %4, %5 : vector<32x128xf32>
    %7 = vector.broadcast %3 : vector<32x1xf32> to vector<32x128xf32>
    %8 = arith.addf %6, %7 : vector<32x128xf32>
    %9 = math.tanh %8 : vector<32x128xf32>
    %c0_3 = arith.constant 0 : index
    %c0_4 = arith.constant 0 : index
    %c0_5 = arith.constant 0 : index
    %10 = vector.load %arg3[%c0_3, %c0_4, %c0_5] : memref<4x32x32xf32, #tpu.memory_space<vmem>>, vector<1x32x32xf32>
    %11 = vector.shape_cast %10 : vector<1x32x32xf32> to vector<32x32xf32>
    %cst = arith.constant dense<0.000000e+00> : vector<32x128xf32>
    %12 = tpu.matmul %11, %9, %cst {dimension_numbers = #tpu.dot_dimension_numbers<[1], [0], [0], [1], [0, 0, 1, 1], [], []>} : vector<32x32xf32>, vector<32x128xf32>, vector<32x128xf32> -> vector<32x128xf32>
    %c0_6 = arith.constant 0 : index
    %c0_7 = arith.constant 0 : index
    %c0_8 = arith.constant 0 : index
    %13 = vector.load %arg4[%c0_6, %c0_7, %c0_8] : memref<4x32x1xf32, #tpu.memory_space<vmem>>, vector<1x32x1xf32>
    %14 = vector.shape_cast %13 : vector<1x32x1xf32> to vector<32x1xf32>
    %15 = vector.broadcast %14 : vector<32x1xf32> to vector<32x128xf32>
    %16 = arith.addf %12, %15 : vector<32x128xf32>
    %17 = math.tanh %16 : vector<32x128xf32>
    %c1 = arith.constant 1 : index
    %c0_9 = arith.constant 0 : index
    %c0_10 = arith.constant 0 : index
    %18 = vector.load %arg3[%c1, %c0_9, %c0_10] : memref<4x32x32xf32, #tpu.memory_space<vmem>>, vector<1x32x32xf32>
    %19 = vector.shape_cast %18 : vector<1x32x32xf32> to vector<32x32xf32>
    %cst_11 = arith.constant dense<0.000000e+00> : vector<32x128xf32>
    %20 = tpu.matmul %19, %17, %cst_11 {dimension_numbers = #tpu.dot_dimension_numbers<[1], [0], [0], [1], [0, 0, 1, 1], [], []>} : vector<32x32xf32>, vector<32x128xf32>, vector<32x128xf32> -> vector<32x128xf32>
    %c1_12 = arith.constant 1 : index
    %c0_13 = arith.constant 0 : index
    %c0_14 = arith.constant 0 : index
    %21 = vector.load %arg4[%c1_12, %c0_13, %c0_14] : memref<4x32x1xf32, #tpu.memory_space<vmem>>, vector<1x32x1xf32>
    %22 = vector.shape_cast %21 : vector<1x32x1xf32> to vector<32x1xf32>
    %23 = vector.broadcast %22 : vector<32x1xf32> to vector<32x128xf32>
    %24 = arith.addf %20, %23 : vector<32x128xf32>
    %25 = math.tanh %24 : vector<32x128xf32>
    %c2 = arith.constant 2 : index
    %c0_15 = arith.constant 0 : index
    %c0_16 = arith.constant 0 : index
    %26 = vector.load %arg3[%c2, %c0_15, %c0_16] : memref<4x32x32xf32, #tpu.memory_space<vmem>>, vector<1x32x32xf32>
    %27 = vector.shape_cast %26 : vector<1x32x32xf32> to vector<32x32xf32>
    %cst_17 = arith.constant dense<0.000000e+00> : vector<32x128xf32>
    %28 = tpu.matmul %27, %25, %cst_17 {dimension_numbers = #tpu.dot_dimension_numbers<[1], [0], [0], [1], [0, 0, 1, 1], [], []>} : vector<32x32xf32>, vector<32x128xf32>, vector<32x128xf32> -> vector<32x128xf32>
    %c2_18 = arith.constant 2 : index
    %c0_19 = arith.constant 0 : index
    %c0_20 = arith.constant 0 : index
    %29 = vector.load %arg4[%c2_18, %c0_19, %c0_20] : memref<4x32x1xf32, #tpu.memory_space<vmem>>, vector<1x32x1xf32>
    %30 = vector.shape_cast %29 : vector<1x32x1xf32> to vector<32x1xf32>
    %31 = vector.broadcast %30 : vector<32x1xf32> to vector<32x128xf32>
    %32 = arith.addf %28, %31 : vector<32x128xf32>
    %33 = math.tanh %32 : vector<32x128xf32>
    %c3 = arith.constant 3 : index
    %c0_21 = arith.constant 0 : index
    %c0_22 = arith.constant 0 : index
    %34 = vector.load %arg3[%c3, %c0_21, %c0_22] : memref<4x32x32xf32, #tpu.memory_space<vmem>>, vector<1x32x32xf32>
    %35 = vector.shape_cast %34 : vector<1x32x32xf32> to vector<32x32xf32>
    %cst_23 = arith.constant dense<0.000000e+00> : vector<32x128xf32>
    %36 = tpu.matmul %35, %33, %cst_23 {dimension_numbers = #tpu.dot_dimension_numbers<[1], [0], [0], [1], [0, 0, 1, 1], [], []>} : vector<32x32xf32>, vector<32x128xf32>, vector<32x128xf32> -> vector<32x128xf32>
    %c3_24 = arith.constant 3 : index
    %c0_25 = arith.constant 0 : index
    %c0_26 = arith.constant 0 : index
    %37 = vector.load %arg4[%c3_24, %c0_25, %c0_26] : memref<4x32x1xf32, #tpu.memory_space<vmem>>, vector<1x32x1xf32>
    %38 = vector.shape_cast %37 : vector<1x32x1xf32> to vector<32x1xf32>
    %39 = vector.broadcast %38 : vector<32x1xf32> to vector<32x128xf32>
    %40 = arith.addf %36, %39 : vector<32x128xf32>
    %41 = math.tanh %40 : vector<32x128xf32>
    %c0_27 = arith.constant 0 : index
    %c0_28 = arith.constant 0 : index
    %42 = vector.load %arg5[%c0_27, %c0_28] : memref<1x32xf32, #tpu.memory_space<vmem>>, vector<1x32xf32>
    %cst_29 = arith.constant dense<0.000000e+00> : vector<1x128xf32>
    %43 = tpu.matmul %42, %41, %cst_29 {dimension_numbers = #tpu.dot_dimension_numbers<[1], [0], [0], [1], [0, 0, 1, 1], [], []>} : vector<1x32xf32>, vector<32x128xf32>, vector<1x128xf32> -> vector<1x128xf32>
    %c0_30 = arith.constant 0 : index
    %c0_31 = arith.constant 0 : index
    %44 = vector.load %arg6[%c0_30, %c0_31] : memref<1x1xf32, #tpu.memory_space<vmem>>, vector<1x1xf32>
    %45 = vector.broadcast %44 : vector<1x1xf32> to vector<1x128xf32>
    %46 = arith.addf %43, %45 : vector<1x128xf32>
    %47 = math.tanh %46 : vector<1x128xf32>
    %c0_32 = arith.constant 0 : index
    %c0_33 = arith.constant 0 : index
    %48 = vector.load %arg7[%c0_32, %c0_33] : memref<1x128xf32, #tpu.memory_space<vmem>>, vector<1x128xf32>
    tpu.vector_store %arg7[%c0_32, %c0_33], %47 {strides = array<i32>} : memref<1x128xf32, #tpu.memory_space<vmem>>, vector<1x128xf32>,
    return
  }
  func.func @transform_0(%arg0: i32) -> (i32, i32) {
    %c0_i32 = arith.constant 0 : i32
    %c0_i32_0 = arith.constant 0 : i32
    return %c0_i32, %arg0 : i32, i32
  }
  func.func @transform_1(%arg0: i32) -> (i32, i32) {
    %c0_i32 = arith.constant 0 : i32
    %c0_i32_0 = arith.constant 0 : i32
    %c0_i32_1 = arith.constant 0 : i32
    return %c0_i32, %c0_i32_0 : i32, i32
  }
  func.func @transform_2(%arg0: i32) -> (i32, i32, i32) {
    %c0_i32 = arith.constant 0 : i32
    %c0_i32_0 = arith.constant 0 : i32
    %c0_i32_1 = arith.constant 0 : i32
    %c0_i32_2 = arith.constant 0 : i32
    return %c0_i32, %c0_i32_0, %c0_i32_1 : i32, i32, i32
  }
  func.func @transform_3(%arg0: i32) -> (i32, i32, i32) {
    %c0_i32 = arith.constant 0 : i32
    %c0_i32_0 = arith.constant 0 : i32
    %c0_i32_1 = arith.constant 0 : i32
    %c0_i32_2 = arith.constant 0 : i32
    return %c0_i32, %c0_i32_0, %c0_i32_1 : i32, i32, i32
  }
  func.func @transform_4(%arg0: i32) -> (i32, i32) {
    %c0_i32 = arith.constant 0 : i32
    %c0_i32_0 = arith.constant 0 : i32
    %c0_i32_1 = arith.constant 0 : i32
    return %c0_i32, %c0_i32_0 : i32, i32
  }
  func.func @transform_5(%arg0: i32) -> (i32, i32) {
    %c0_i32 = arith.constant 0 : i32
    %c0_i32_0 = arith.constant 0 : i32
    %c0_i32_1 = arith.constant 0 : i32
    return %c0_i32, %c0_i32_0 : i32, i32
  }
  func.func @transform_6(%arg0: i32) -> (i32, i32) {
    %c0_i32 = arith.constant 0 : i32
    %c0_i32_0 = arith.constant 0 : i32
    return %c0_i32, %arg0 : i32, i32
  }
}

</mosaic_0001>

<llo_original>
// kernel: tpu_custom_call.1
$region0: #{tpu_custom_call.1}
  #allocation0 [shape = 'u32[]', space=smem, size = 0x4, offset = 0x4, fixed_abs, tag = 'smem constant byte address 0x4 - core index']
  #allocation1 [shape = 'u32[144,128]{1,0:T(1,128)}', space=vmem, size = 0x12000, scoped, tag = 'internal scratch']
  #allocation2 [shape = 'f32[1,1]{1,0:T(1,128)S(1)}', space=vmem, size = 0x200, scoped, tag = 'scoped memory for tpu_custom_call.1']
  %s0 = inlined_call_operand.vmem [shape: f32[1,256], index: 0, kind: input, shape index: {}]
  %s1 = inlined_call_operand.vmem [shape: f32[32,2], index: 1, kind: input, shape index: {}]
  %s2 = inlined_call_operand.vmem [shape: f32[4,32,32], index: 2, kind: input, shape index: {}]
  %s3 = inlined_call_operand.vmem [shape: f32[4,32,1], index: 3, kind: input, shape index: {}]
  %s4 = inlined_call_operand.vmem [shape: f32[1,32], index: 4, kind: input, shape index: {}]
  %s5 = inlined_call_operand.<no memory space> [shape: f32[1,1], index: 5, kind: input, shape index: {}]
  %s6 = inlined_call_operand.hbm [shape: f32[1,256], index: 6, kind: output, shape index: {}]
  %s7 = sld [smem:[#allocation0]]
  $region57: #{tpu_custom_call.1} parent=0
    _
  %s9 = ssub.s32 1, %s7
  %s10 = scalar_select 0, %s9, %s7
  %v11 = vstv %s5
  %12 = vst [vmem:[#allocation2] sm:$0x1] %v11
  $region1: #{tpu_custom_call.1} parent=0
    #allocation3 [shape = 'u8[1024]{0}', space=vmem, size = 0x400, scoped, tag = 'output window, operand 0']
    #allocation4 [shape = 's32[2]{0}', space=sflag, size = 0x8, scoped, tag = 'scoped memory for tpu_custom_call.1']
    %13 = vsyncpa [#allocation4], 0
    %s14 = scalar_lea.sflag [#allocation4], 1
    %15 = vsyncpa %s14, 0
    loop: start=0, step=1, limit=4
    $region2: #{tpu_custom_call.1} parent=1 // loop_pre_header
      _
    $region3: #{tpu_custom_call.1} parent=1 // loop_header
      %s17 = sphi 0, %s21
      %p18 = scmp.ge.s32.totalorder %s17, 4
      %s27 = sphi 0, %s29
      %s30 = sphi 0, %s27
      %s31 = sphi 0, %s30
      %s47 = sphi 0, %s31
      %s51 = sphi 0, %s51
      %s53 = sphi 0, %s51
      %s54 = sphi 0, %s53
      %s68 = sphi 0, %s54
      %s72 = sphi 0, %s72
      %s74 = sphi 0, %s72
      %s75 = sphi 0, %s74
      %s89 = sphi 0, %s75
      %s93 = sphi 0, %s93
      %s95 = sphi 0, %s93
      %s96 = sphi 0, %s95
      %s110 = sphi 0, %s96
      %s114 = sphi 0, %s114
      %s116 = sphi 0, %s114
      %s117 = sphi 0, %s116
      %s131 = sphi 0, %s117
      %s135 = sphi 0, %s135
      %s137 = sphi 0, %s135
      %s138 = sphi 0, %s137
      %s152 = sphi 0, %s138
      %s158 = sphi 0, %s160
      %s161 = sphi 0, %s158
      %s162 = sphi 0, %s161
      %s178 = sphi 0, %s162
    $region4: #{tpu_custom_call.1} parent=1 // loop_header_branch
      %20 = sbr.rel (%p18) target = $region8
    $region5: #{tpu_custom_call.1} parent=1 // loop_body
      %s22 = ssub.s32 %s17, 1
      %s23 = ssub.s32 %s17, 2
      %s24 = sadd.s32 %s17, 1
      %s25 = ssub.s32 %s17, %s24
      %p26 = scmp.eq.s32.totalorder %s25, 0
      %s28 = sadd.s32 %s27, 1
      %s29 = scalar_select %p26, %s27, %s28
      %p32 = pneg %p26
      %p33 = scmp.eq.s32.totalorder %s17, 1
      %p34 = por %p32, %p33
      %p35 = scmp.ne.s32.totalorder %s27, %s30
      %p36 = scmp.eq.s32.totalorder %s17, 0
      %p37 = por %p35, %p36
      %p38 = scmp.ne.s32.totalorder %s27, %s30
      %p39 = scmp.eq.s32.totalorder %s22, 1
      %p40 = por %p38, %p39
      %p41 = scmp.ne.s32.totalorder %s30, %s31
      %p42 = scmp.eq.s32.totalorder %s22, 0
      %p43 = por %p41, %p42
      %p44 = scmp.ne.s32.totalorder %s30, %s31
      %p45 = scmp.eq.s32.totalorder %s23, 1
      %p46 = por %p44, %p45
      %p48 = scmp.ne.s32.totalorder %s31, %s47
      %p49 = scmp.eq.s32.totalorder %s23, 0
      %p50 = por %p48, %p49
      %s52 = sadd.s32 %s51, 1
      %p55 = scmp.eq.s32.totalorder %s17, 1
      %p56 = scmp.ne.s32.totalorder %s51, %s53
      %p57 = scmp.eq.s32.totalorder %s17, 0
      %p58 = por %p56, %p57
      %p59 = scmp.ne.s32.totalorder %s51, %s53
      %p60 = scmp.eq.s32.totalorder %s22, 1
      %p61 = por %p59, %p60
      %p62 = scmp.ne.s32.totalorder %s53, %s54
      %p63 = scmp.eq.s32.totalorder %s22, 0
      %p64 = por %p62, %p63
      %p65 = scmp.ne.s32.totalorder %s53, %s54
      %p66 = scmp.eq.s32.totalorder %s23, 1
      %p67 = por %p65, %p66
      %p69 = scmp.ne.s32.totalorder %s54, %s68
      %p70 = scmp.eq.s32.totalorder %s23, 0
      %p71 = por %p69, %p70
      %s73 = sadd.s32 %s72, 1
      %p76 = scmp.eq.s32.totalorder %s17, 1
      %p77 = scmp.ne.s32.totalorder %s72, %s74
      %p78 = scmp.eq.s32.totalorder %s17, 0
      %p79 = por %p77, %p78
      %p80 = scmp.ne.s32.totalorder %s72, %s74
      %p81 = scmp.eq.s32.totalorder %s22, 1
      %p82 = por %p80, %p81
      %p83 = scmp.ne.s32.totalorder %s74, %s75
      %p84 = scmp.eq.s32.totalorder %s22, 0
      %p85 = por %p83, %p84
      %p86 = scmp.ne.s32.totalorder %s74, %s75
      %p87 = scmp.eq.s32.totalorder %s23, 1
      %p88 = por %p86, %p87
      %p90 = scmp.ne.s32.totalorder %s75, %s89
      %p91 = scmp.eq.s32.totalorder %s23, 0
      %p92 = por %p90, %p91
      %s94 = sadd.s32 %s93, 1
      %p97 = scmp.eq.s32.totalorder %s17, 1
      %p98 = scmp.ne.s32.totalorder %s93, %s95
      %p99 = scmp.eq.s32.totalorder %s17, 0
      %p100 = por %p98, %p99
      %p101 = scmp.ne.s32.totalorder %s93, %s95
      %p102 = scmp.eq.s32.totalorder %s22, 1
      %p103 = por %p101, %p102
      %p104 = scmp.ne.s32.totalorder %s95, %s96
      %p105 = scmp.eq.s32.totalorder %s22, 0
      %p106 = por %p104, %p105
      %p107 = scmp.ne.s32.totalorder %s95, %s96
      %p108 = scmp.eq.s32.totalorder %s23, 1
      %p109 = por %p107, %p108
      %p111 = scmp.ne.s32.totalorder %s96, %s110
      %p112 = scmp.eq.s32.totalorder %s23, 0
      %p113 = por %p111, %p112
      %s115 = sadd.s32 %s114, 1
      %p118 = scmp.eq.s32.totalorder %s17, 1
      %p119 = scmp.ne.s32.totalorder %s114, %s116
      %p120 = scmp.eq.s32.totalorder %s17, 0
      %p121 = por %p119, %p120
      %p122 = scmp.ne.s32.totalorder %s114, %s116
      %p123 = scmp.eq.s32.totalorder %s22, 1
      %p124 = por %p122, %p123
      %p125 = scmp.ne.s32.totalorder %s116, %s117
      %p126 = scmp.eq.s32.totalorder %s22, 0
      %p127 = por %p125, %p126
      %p128 = scmp.ne.s32.totalorder %s116, %s117
      %p129 = scmp.eq.s32.totalorder %s23, 1
      %p130 = por %p128, %p129
      %p132 = scmp.ne.s32.totalorder %s117, %s131
      %p133 = scmp.eq.s32.totalorder %s23, 0
      %p134 = por %p132, %p133
      %s136 = sadd.s32 %s135, 1
      %p139 = scmp.eq.s32.totalorder %s17, 1
      %p140 = scmp.ne.s32.totalorder %s135, %s137
      %p141 = scmp.eq.s32.totalorder %s17, 0
      %p142 = por %p140, %p141
      %p143 = scmp.ne.s32.totalorder %s135, %s137
      %p144 = scmp.eq.s32.totalorder %s22, 1
      %p145 = por %p143, %p144
      %p146 = scmp.ne.s32.totalorder %s137, %s138
      %p147 = scmp.eq.s32.totalorder %s22, 0
      %p148 = por %p146, %p147
      %p149 = scmp.ne.s32.totalorder %s137, %s138
      %p150 = scmp.eq.s32.totalorder %s23, 1
      %p151 = por %p149, %p150
      %p153 = scmp.ne.s32.totalorder %s138, %s152
      %p154 = scmp.eq.s32.totalorder %s23, 0
      %p155 = por %p153, %p154
      %s156 = ssub.s32 %s17, %s24
      %p157 = scmp.eq.s32.totalorder %s156, 0
      %s159 = sadd.s32 %s158, 1
      %s160 = scalar_select %p157, %s158, %s159
      %p163 = pneg %p157
      %p164 = scmp.eq.s32.totalorder %s17, 1
      %p165 = por %p163, %p164
      %p166 = scmp.ne.s32.totalorder %s158, %s161
      %p167 = scmp.eq.s32.totalorder %s17, 0
      %p168 = por %p166, %p167
      %p169 = scmp.ne.s32.totalorder %s158, %s161
      %p170 = scmp.eq.s32.totalorder %s22, 1
      %p171 = por %p169, %p170
      %p172 = scmp.ne.s32.totalorder %s161, %s162
      %p173 = scmp.eq.s32.totalorder %s22, 0
      %p174 = por %p172, %p173
      %p175 = scmp.ne.s32.totalorder %s161, %s162
      %p176 = scmp.eq.s32.totalorder %s23, 1
      %p177 = por %p175, %p176
      %p179 = scmp.ne.s32.totalorder %s162, %s178
      %p180 = scmp.eq.s32.totalorder %s23, 0
      %p181 = por %p179, %p180
      %p182 = scmp.le.s32.totalorder 1, %s17
      %p183 = scmp.lt.s32.totalorder %s17, 3
      %p184 = pnand %p182, %p183
      %p185 = pneg %p184
      // Predicated region
      $region9: #{tpu_custom_call.1} parent=5 // pred_check
        _
      $region10: #{tpu_custom_call.1} parent=5 // pred_check_branch
        %187 = sbr.rel (%p184) target = $region12
      $region11: #{tpu_custom_call.1} parent=5 // pred_region
        %s188 = ssub.s32 %s17, 1
        // Predicated region
        $region13: #{tpu_custom_call.1} parent=11 // pred_check
          %p189 = pneg %p64
        $region14: #{tpu_custom_call.1} parent=11 // pred_check_branch
          %191 = sbr.rel (%p189) target = $region16
        $region15: #{tpu_custom_call.1} parent=11 // pred_region
          _
        $region16: #{tpu_custom_call.1} parent=11 // pred_fallthru
          _
        // Predicated region
        $region17: #{tpu_custom_call.1} parent=11 // pred_check
          %p192 = pneg %p85
        $region18: #{tpu_custom_call.1} parent=11 // pred_check_branch
          %194 = sbr.rel (%p192) target = $region20
        $region19: #{tpu_custom_call.1} parent=11 // pred_region
          _
        $region20: #{tpu_custom_call.1} parent=11 // pred_fallthru
          _
        // Predicated region
        $region21: #{tpu_custom_call.1} parent=11 // pred_check
          %p195 = pneg %p106
        $region22: #{tpu_custom_call.1} parent=11 // pred_check_branch
          %197 = sbr.rel (%p195) target = $region24
        $region23: #{tpu_custom_call.1} parent=11 // pred_region
          _
        $region24: #{tpu_custom_call.1} parent=11 // pred_fallthru
          _
        // Predicated region
        $region25: #{tpu_custom_call.1} parent=11 // pred_check
          %p198 = pneg %p127
        $region26: #{tpu_custom_call.1} parent=11 // pred_check_branch
          %200 = sbr.rel (%p198) target = $region28
        $region27: #{tpu_custom_call.1} parent=11 // pred_region
          _
        $region28: #{tpu_custom_call.1} parent=11 // pred_fallthru
          _
        // Predicated region
        $region29: #{tpu_custom_call.1} parent=11 // pred_check
          %p201 = pneg %p148
        $region30: #{tpu_custom_call.1} parent=11 // pred_check_branch
          %203 = sbr.rel (%p201) target = $region32
        $region31: #{tpu_custom_call.1} parent=11 // pred_region
          _
        $region32: #{tpu_custom_call.1} parent=11 // pred_fallthru
          _
      $region12: #{tpu_custom_call.1} parent=5 // pred_fallthru
        _
      %p204 = scmp.lt.s32.totalorder %s17, 2
      // Predicated region
      $region33: #{tpu_custom_call.1} parent=5 // pred_check
        %p205 = pneg %p204
      $region34: #{tpu_custom_call.1} parent=5 // pred_check_branch
        %207 = sbr.rel (%p205) target = $region36
      $region35: #{tpu_custom_call.1} parent=5 // pred_region
        // Predicated region
        $region37: #{tpu_custom_call.1} parent=35 // pred_check
          %p208 = pneg %p37
        $region38: #{tpu_custom_call.1} parent=35 // pred_check_branch
          %210 = sbr.rel (%p208) target = $region40
        $region39: #{tpu_custom_call.1} parent=35 // pred_region
          %p211 = scmp.lt.s32.totalorder %s17, 1
          %s212 = scalar_select %p211, %s17, 1
          %s213 = scalar_lea.vmem %s0, %s212
        $region40: #{tpu_custom_call.1} parent=35 // pred_fallthru
          _
      $region36: #{tpu_custom_call.1} parent=5 // pred_fallthru
        _
      %p214 = scmp.le.s32.totalorder 1, %s17
      %p215 = scmp.lt.s32.totalorder %s17, 3
      %p216 = pnand %p214, %p215
      %p217 = pneg %p216
      // Predicated region
      $region41: #{tpu_custom_call.1} parent=5 // pred_check
        _
      $region42: #{tpu_custom_call.1} parent=5 // pred_check_branch
        %219 = sbr.rel (%p216) target = $region44
      $region43: #{tpu_custom_call.1} parent=5 // pred_region
        %s220 = ssub.s32 %s17, 1
        %p221 = scmp.lt.s32.totalorder %s22, 1
        %s222 = scalar_select %p221, %s22, 1
        %s223 = scalar_lea.vmem %s0, %s222
        %p224 = pneg %p43
        %p225 = pneg %p40
        %p226 = pneg %p64
        %p227 = pneg %p61
        %p228 = pneg %p85
        %p229 = pneg %p82
        %p230 = pneg %p106
        %p231 = pneg %p103
        %p232 = pneg %p127
        %p233 = pneg %p124
        %p234 = pneg %p148
        %p235 = pneg %p145
        %p236 = pneg %p174
        %p237 = pneg %p171
        %s238 = sand.u32 %s161, 1
        %s239 = scalar_lea.sflag [#allocation4], %s238
        %s240 = sand.u32 %s161, 1
        %s241 = scalar_lea.vmem [#allocation3], %s240
        %p242 = scmp.lt.s32.totalorder %s22, 1
        %s243 = scalar_select %p242, %s22, 1
        %s244 = scalar_lea.vmem %s0, %s243
        %v245 = vld [vmem:[%s244] sm:$0x1]
        %v246 = vld [vmem:[%s1] sm:$0xff]
        %v247 = vld [vmem:[%s1 + $0x8] sm:$0xff]
        %v248 = vld [vmem:[%s1 + $0x10] sm:$0xff]
        %v249 = vld [vmem:[%s1 + $0x18] sm:$0xff]
        %251 = vset.pattern.permute.xlu0 0
        %252 = vperm.xlu0 %251, %v246
        %v253 = vpop.permute.xlu0 %252
        %256 = vset.pattern.permute.xlu0 0
        %257 = vperm.xlu0 %256, %v247
        %v258 = vpop.permute.xlu0 %257
        %261 = vset.pattern.permute.xlu0 0
        %262 = vperm.xlu0 %261, %v248
        %v263 = vpop.permute.xlu0 %262
        %266 = vset.pattern.permute.xlu0 0
        %267 = vperm.xlu0 %266, %v249
        %v268 = vpop.permute.xlu0 %267
        %v271 = vlaneseq
        %v272 = vshrl.u32 %v271, 7
        %v273 = vsub.s32 0, %v272
        %v274 = vrot.slane %v245, %v273
        %v276 = vmul.f32 %v253, %v274
        %v277 = vmul.f32 %v258, %v274
        %v278 = vmul.f32 %v263, %v274
        %v279 = vmul.f32 %v268, %v274
        %280 = vset.pattern.permute.xlu0 1
        %281 = vperm.xlu0 %280, %v246
        %v282 = vpop.permute.xlu0 %281
        %284 = vset.pattern.permute.xlu0 1
        %285 = vperm.xlu0 %284, %v247
        %v286 = vpop.permute.xlu0 %285
        %288 = vset.pattern.permute.xlu0 1
        %289 = vperm.xlu0 %288, %v248
        %v290 = vpop.permute.xlu0 %289
        %292 = vset.pattern.permute.xlu0 1
        %293 = vperm.xlu0 %292, %v249
        %v294 = vpop.permute.xlu0 %293
        %v296 = vadd.f32 %v276, %v282
        %v297 = vadd.f32 %v277, %v286
        %v298 = vadd.f32 %v278, %v290
        %v299 = vadd.f32 %v279, %v294
        %v300 = vtanh.pop %v296
        %v301 = vtanh.pop %v297
        %v302 = vtanh.pop %v298
        %v303 = vtanh.pop %v299
        %v304 = vld [vmem:[%s2] sm:$0xff]
        %v305 = vld [vmem:[%s2 + $0x8] sm:$0xff]
        %v306 = vld [vmem:[%s2 + $0x10] sm:$0xff]
        %v307 = vld [vmem:[%s2 + $0x18] sm:$0xff]
        %v308 = vld [vmem:[%s3] sm:$0xff]
        %v309 = vld [vmem:[%s3 + $0x8] sm:$0xff]
        %v310 = vld [vmem:[%s3 + $0x10] sm:$0xff]
        %v311 = vld [vmem:[%s3 + $0x18] sm:$0xff]
        %313 = vset.pattern.permute.xlu0 0
        %314 = vperm.xlu0 %313, %v308
        %v315 = vpop.permute.xlu0 %314
        %318 = vset.pattern.permute.xlu0 0
        %319 = vperm.xlu0 %318, %v309
        %v320 = vpop.permute.xlu0 %319
        %323 = vset.pattern.permute.xlu0 0
        %324 = vperm.xlu0 %323, %v310
        %v325 = vpop.permute.xlu0 %324
        %328 = vset.pattern.permute.xlu0 0
        %329 = vperm.xlu0 %328, %v311
        %v330 = vpop.permute.xlu0 %329
        %vm332 = vcmask 261120
        %v334 = vsel %vm332, %v304, 0
        %v337 = vsel %vm332, %v305, 0
        %v340 = vsel %vm332, %v306, 0
        %v343 = vsel %vm332, %v307, 0
        %345 = vmatprep.subr.mxu0 0.0
        %346 = vmatpush1.msra.mxu0 %v300
        %347 = vmatprep.subr.mxu0 0.0
        %348 = vmatpush1.msra.mxu0 %v301
        %349 = vmatprep.subr.mxu0 0.0
        %350 = vmatpush1.msra.mxu0 %v302
        %351 = vmatprep.subr.mxu0 0.0
        %352 = vmatpush1.msra.mxu0 %v303
        %353 = vmatprep.subr.mxu0 0.0
        %354 = vmatpush1.msra.mxu0 0.0
        %355 = vmatprep.subr.mxu0 0.0
        %356 = vmatpush1.msra.mxu0 0.0
        %357 = vmatprep.subr.mxu0 0.0
        %358 = vmatpush1.msra.mxu0 0.0
        %359 = vmatprep.subr.mxu0 0.0
        %360 = vmatpush1.msra.mxu0 0.0
        %361 = vmatprep.subr.mxu0 0.0
        %362 = vmatpush1.msra.mxu0 0.0
        %363 = vmatprep.subr.mxu0 0.0
        %364 = vmatpush1.msra.mxu0 0.0
        %365 = vmatprep.subr.mxu0 0.0
        %366 = vmatpush1.msra.mxu0 0.0
        %367 = vmatprep.subr.mxu0 0.0
        %368 = vmatpush1.msra.mxu0 0.0
        %369 = vmatprep.subr.mxu0 0.0
        %370 = vmatpush1.msra.mxu0 0.0
        %371 = vmatprep.subr.mxu0 0.0
        %372 = vmatpush1.msra.mxu0 0.0
        %373 = vmatprep.subr.mxu0 0.0
        %374 = vmatpush1.msra.mxu0 0.0
        %375 = vmatprep.subr.mxu0 0.0
        %376 = vmatpush1.msra.mxu0 0.0
        %377 = vmatprep.subr.mxu0 0.0
        %378 = vmatpush1.msra.mxu0 0.0
        %379 = vmatprep.subr.mxu0 0.0
        %380 = vmatpush1.msra.mxu0 0.0
        %381 = vmatprep.subr.mxu0 0.0
        %382 = vmatpush1.msra.mxu0 0.0
        %383 = vmatprep.subr.mxu0 0.0
        %384 = vmatpush1.msra.mxu0 0.0
        %385 = vmatprep.subr.mxu0 0.0
        %386 = vmatpush1.msra.mxu0 0.0
        %387 = vmatprep.subr.mxu0 0.0
        %388 = vmatpush1.msra.mxu0 0.0
        %389 = vmatprep.subr.mxu0 0.0
        %390 = vmatpush1.msra.mxu0 0.0
        %391 = vmatprep.subr.mxu0 0.0
        %392 = vmatpush1.msra.mxu0 0.0
        %393 = vmatprep.subr.mxu0 0.0
        %394 = vmatpush1.msra.mxu0 0.0
        %395 = vmatprep.subr.mxu0 0.0
        %396 = vmatpush1.msra.mxu0 0.0
        %397 = vmatprep.subr.mxu0 0.0
        %398 = vmatpush1.msra.mxu0 0.0
        %399 = vmatprep.subr.mxu0 0.0
        %400 = vmatpush1.msra.mxu0 0.0
        %401 = vmatprep.subr.mxu0 0.0
        %402 = vmatpush1.msra.mxu0 0.0
        %403 = vmatprep.subr.mxu0 0.0
        %404 = vmatpush1.msra.mxu0 0.0
        %405 = vmatprep.subr.mxu0 0.0
        %406 = vmatpush1.msra.mxu0 0.0
        %407 = vmatprep.subr.mxu0 0.0
        %408 = vmatpush1.msra.mxu0 0.0
        %409 = vmatprep.mubr.f32.mxu0 0.0
        %410 = vmatmul.mubr.f32.gmra.mrb[0].mxu0 %v334
        %v411 = vpop.f32.mrb[0].mxu0
        %v412 = vadd.f32 %v315, %v411
        %v413 = vpop.f32.mrb[0].mxu0
        %414 = vmatprep.mubr.f32.mxu0 0.0
        %415 = vmatmul.mubr.f32.gmra.mrb[0].mxu0 %v337
        %v416 = vpop.f32.mrb[0].mxu0
        %v417 = vadd.f32 %v320, %v416
        %v418 = vpop.f32.mrb[0].mxu0
        %419 = vmatprep.mubr.f32.mxu0 0.0
        %420 = vmatmul.mubr.f32.gmra.mrb[0].mxu0 %v340
        %v421 = vpop.f32.mrb[0].mxu0
        %v422 = vadd.f32 %v325, %v421
        %v423 = vpop.f32.mrb[0].mxu0
        %424 = vmatprep.mubr.f32.mxu0 0.0
        %425 = vmatmul.mubr.f32.gmra.mrb[0].mxu0 %v343
        %v426 = vpop.f32.mrb[0].mxu0
        %v427 = vadd.f32 %v330, %v426
        %v428 = vpop.f32.mrb[0].mxu0
        %429 = vdwg.mxu0
        %v430 = vtanh.pop %v412
        %v431 = vtanh.pop %v417
        %v432 = vtanh.pop %v422
        %v433 = vtanh.pop %v427
        %s434 = scalar_lea.vmem %s2, 32
        %v435 = vld [vmem:[%s434] sm:$0xff]
        %v436 = vld [vmem:[%s434 + $0x8] sm:$0xff]
        %v437 = vld [vmem:[%s434 + $0x10] sm:$0xff]
        %v438 = vld [vmem:[%s434 + $0x18] sm:$0xff]
        %s439 = scalar_lea.vmem %s3, 32
        %v440 = vld [vmem:[%s439] sm:$0xff]
        %v441 = vld [vmem:[%s439 + $0x8] sm:$0xff]
        %v442 = vld [vmem:[%s439 + $0x10] sm:$0xff]
        %v443 = vld [vmem:[%s439 + $0x18] sm:$0xff]
        %445 = vset.pattern.permute.xlu0 0
        %446 = vperm.xlu0 %445, %v440
        %v447 = vpop.permute.xlu0 %446
        %450 = vset.pattern.permute.xlu0 0
        %451 = vperm.xlu0 %450, %v441
        %v452 = vpop.permute.xlu0 %451
        %455 = vset.pattern.permute.xlu0 0
        %456 = vperm.xlu0 %455, %v442
        %v457 = vpop.permute.xlu0 %456
        %460 = vset.pattern.permute.xlu0 0
        %461 = vperm.xlu0 %460, %v443
        %v462 = vpop.permute.xlu0 %461
        %v465 = vsel %vm332, %v435, 0
        %v468 = vsel %vm332, %v436, 0
        %v471 = vsel %vm332, %v437, 0
        %v474 = vsel %vm332, %v438, 0
        %476 = vmatprep.subr.mxu0 0.0
        %477 = vmatpush1.msra.mxu0 %v430
        %478 = vmatprep.subr.mxu0 0.0
        %479 = vmatpush1.msra.mxu0 %v431
        %480 = vmatprep.subr.mxu0 0.0
        %481 = vmatpush1.msra.mxu0 %v432
        %482 = vmatprep.subr.mxu0 0.0
        %483 = vmatpush1.msra.mxu0 %v433
        %484 = vmatprep.subr.mxu0 0.0
        %485 = vmatpush1.msra.mxu0 0.0
        %486 = vmatprep.subr.mxu0 0.0
        %487 = vmatpush1.msra.mxu0 0.0
        %488 = vmatprep.subr.mxu0 0.0
        %489 = vmatpush1.msra.mxu0 0.0
        %490 = vmatprep.subr.mxu0 0.0
        %491 = vmatpush1.msra.mxu0 0.0
        %492 = vmatprep.subr.mxu0 0.0
        %493 = vmatpush1.msra.mxu0 0.0
        %494 = vmatprep.subr.mxu0 0.0
        %495 = vmatpush1.msra.mxu0 0.0
        %496 = vmatprep.subr.mxu0 0.0
        %497 = vmatpush1.msra.mxu0 0.0
        %498 = vmatprep.subr.mxu0 0.0
        %499 = vmatpush1.msra.mxu0 0.0
        %500 = vmatprep.subr.mxu0 0.0
        %501 = vmatpush1.msra.mxu0 0.0
        %502 = vmatprep.subr.mxu0 0.0
        %503 = vmatpush1.msra.mxu0 0.0
        %504 = vmatprep.subr.mxu0 0.0
        %505 = vmatpush1.msra.mxu0 0.0
        %506 = vmatprep.subr.mxu0 0.0
        %507 = vmatpush1.msra.mxu0 0.0
        %508 = vmatprep.subr.mxu0 0.0
        %509 = vmatpush1.msra.mxu0 0.0
        %510 = vmatprep.subr.mxu0 0.0
        %511 = vmatpush1.msra.mxu0 0.0
        %512 = vmatprep.subr.mxu0 0.0
        %513 = vmatpush1.msra.mxu0 0.0
        %514 = vmatprep.subr.mxu0 0.0
        %515 = vmatpush1.msra.mxu0 0.0
        %516 = vmatprep.subr.mxu0 0.0
        %517 = vmatpush1.msra.mxu0 0.0
        %518 = vmatprep.subr.mxu0 0.0
        %519 = vmatpush1.msra.mxu0 0.0
        %520 = vmatprep.subr.mxu0 0.0
        %521 = vmatpush1.msra.mxu0 0.0
        %522 = vmatprep.subr.mxu0 0.0
        %523 = vmatpush1.msra.mxu0 0.0
        %524 = vmatprep.subr.mxu0 0.0
        %525 = vmatpush1.msra.mxu0 0.0
        %526 = vmatprep.subr.mxu0 0.0
        %527 = vmatpush1.msra.mxu0 0.0
        %528 = vmatprep.subr.mxu0 0.0
        %529 = vmatpush1.msra.mxu0 0.0
        %530 = vmatprep.subr.mxu0 0.0
        %531 = vmatpush1.msra.mxu0 0.0
        %532 = vmatprep.subr.mxu0 0.0
        %533 = vmatpush1.msra.mxu0 0.0
        %534 = vmatprep.subr.mxu0 0.0
        %535 = vmatpush1.msra.mxu0 0.0
        %536 = vmatprep.subr.mxu0 0.0
        %537 = vmatpush1.msra.mxu0 0.0
        %538 = vmatprep.subr.mxu0 0.0
        %539 = vmatpush1.msra.mxu0 0.0
        %540 = vmatprep.mubr.f32.mxu0 0.0
        %541 = vmatmul.mubr.f32.gmra.mrb[0].mxu0 %v465
        %v542 = vpop.f32.mrb[0].mxu0
        %v543 = vadd.f32 %v447, %v542
        %v544 = vpop.f32.mrb[0].mxu0
        %545 = vmatprep.mubr.f32.mxu0 0.0
        %546 = vmatmul.mubr.f32.gmra.mrb[0].mxu0 %v468
        %v547 = vpop.f32.mrb[0].mxu0
        %v548 = vadd.f32 %v452, %v547
        %v549 = vpop.f32.mrb[0].mxu0
        %550 = vmatprep.mubr.f32.mxu0 0.0
        %551 = vmatmul.mubr.f32.gmra.mrb[0].mxu0 %v471
        %v552 = vpop.f32.mrb[0].mxu0
        %v553 = vadd.f32 %v457, %v552
        %v554 = vpop.f32.mrb[0].mxu0
        %555 = vmatprep.mubr.f32.mxu0 0.0
        %556 = vmatmul.mubr.f32.gmra.mrb[0].mxu0 %v474
        %v557 = vpop.f32.mrb[0].mxu0
        %v558 = vadd.f32 %v462, %v557
        %v559 = vpop.f32.mrb[0].mxu0
        %560 = vdwg.mxu0
        %v561 = vtanh.pop %v543
        %v562 = vtanh.pop %v548
        %v563 = vtanh.pop %v553
        %v564 = vtanh.pop %v558
        %s565 = scalar_lea.vmem %s2, 64
        %v566 = vld [vmem:[%s565] sm:$0xff]
        %v567 = vld [vmem:[%s565 + $0x8] sm:$0xff]
        %v568 = vld [vmem:[%s565 + $0x10] sm:$0xff]
        %v569 = vld [vmem:[%s565 + $0x18] sm:$0xff]
        %s570 = scalar_lea.vmem %s3, 64
        %v571 = vld [vmem:[%s570] sm:$0xff]
        %v572 = vld [vmem:[%s570 + $0x8] sm:$0xff]
        %v573 = vld [vmem:[%s570 + $0x10] sm:$0xff]
        %v574 = vld [vmem:[%s570 + $0x18] sm:$0xff]
        %576 = vset.pattern.permute.xlu0 0
        %577 = vperm.xlu0 %576, %v571
        %v578 = vpop.permute.xlu0 %577
        %581 = vset.pattern.permute.xlu0 0
        %582 = vperm.xlu0 %581, %v572
        %v583 = vpop.permute.xlu0 %582
        %586 = vset.pattern.permute.xlu0 0
        %587 = vperm.xlu0 %586, %v573
        %v588 = vpop.permute.xlu0 %587
        %591 = vset.pattern.permute.xlu0 0
        %592 = vperm.xlu0 %591, %v574
        %v593 = vpop.permute.xlu0 %592
        %v596 = vsel %vm332, %v566, 0
        %v599 = vsel %vm332, %v567, 0
        %v602 = vsel %vm332, %v568, 0
        %v605 = vsel %vm332, %v569, 0
        %607 = vmatprep.subr.mxu0 0.0
        %608 = vmatpush1.msra.mxu0 %v561
        %609 = vmatprep.subr.mxu0 0.0
        %610 = vmatpush1.msra.mxu0 %v562
        %611 = vmatprep.subr.mxu0 0.0
        %612 = vmatpush1.msra.mxu0 %v563
        %613 = vmatprep.subr.mxu0 0.0
        %614 = vmatpush1.msra.mxu0 %v564
        %615 = vmatprep.subr.mxu0 0.0
        %616 = vmatpush1.msra.mxu0 0.0
        %617 = vmatprep.subr.mxu0 0.0
        %618 = vmatpush1.msra.mxu0 0.0
        %619 = vmatprep.subr.mxu0 0.0
        %620 = vmatpush1.msra.mxu0 0.0
        %621 = vmatprep.subr.mxu0 0.0
        %622 = vmatpush1.msra.mxu0 0.0
        %623 = vmatprep.subr.mxu0 0.0
        %624 = vmatpush1.msra.mxu0 0.0
        %625 = vmatprep.subr.mxu0 0.0
        %626 = vmatpush1.msra.mxu0 0.0
        %627 = vmatprep.subr.mxu0 0.0
        %628 = vmatpush1.msra.mxu0 0.0
        %629 = vmatprep.subr.mxu0 0.0
        %630 = vmatpush1.msra.mxu0 0.0
        %631 = vmatprep.subr.mxu0 0.0
        %632 = vmatpush1.msra.mxu0 0.0
        %633 = vmatprep.subr.mxu0 0.0
        %634 = vmatpush1.msra.mxu0 0.0
        %635 = vmatprep.subr.mxu0 0.0
        %636 = vmatpush1.msra.mxu0 0.0
        %637 = vmatprep.subr.mxu0 0.0
        %638 = vmatpush1.msra.mxu0 0.0
        %639 = vmatprep.subr.mxu0 0.0
        %640 = vmatpush1.msra.mxu0 0.0
        %641 = vmatprep.subr.mxu0 0.0
        %642 = vmatpush1.msra.mxu0 0.0
        %643 = vmatprep.subr.mxu0 0.0
        %644 = vmatpush1.msra.mxu0 0.0
        %645 = vmatprep.subr.mxu0 0.0
        %646 = vmatpush1.msra.mxu0 0.0
        %647 = vmatprep.subr.mxu0 0.0
        %648 = vmatpush1.msra.mxu0 0.0
        %649 = vmatprep.subr.mxu0 0.0
        %650 = vmatpush1.msra.mxu0 0.0
        %651 = vmatprep.subr.mxu0 0.0
        %652 = vmatpush1.msra.mxu0 0.0
        %653 = vmatprep.subr.mxu0 0.0
        %654 = vmatpush1.msra.mxu0 0.0
        %655 = vmatprep.subr.mxu0 0.0
        %656 = vmatpush1.msra.mxu0 0.0
        %657 = vmatprep.subr.mxu0 0.0
        %658 = vmatpush1.msra.mxu0 0.0
        %659 = vmatprep.subr.mxu0 0.0
        %660 = vmatpush1.msra.mxu0 0.0
        %661 = vmatprep.subr.mxu0 0.0
        %662 = vmatpush1.msra.mxu0 0.0
        %663 = vmatprep.subr.mxu0 0.0
        %664 = vmatpush1.msra.mxu0 0.0
        %665 = vmatprep.subr.mxu0 0.0
        %666 = vmatpush1.msra.mxu0 0.0
        %667 = vmatprep.subr.mxu0 0.0
        %668 = vmatpush1.msra.mxu0 0.0
        %669 = vmatprep.subr.mxu0 0.0
        %670 = vmatpush1.msra.mxu0 0.0
        %671 = vmatprep.mubr.f32.mxu0 0.0
        %672 = vmatmul.mubr.f32.gmra.mrb[0].mxu0 %v596
        %v673 = vpop.f32.mrb[0].mxu0
        %v674 = vadd.f32 %v578, %v673
        %v675 = vpop.f32.mrb[0].mxu0
        %676 = vmatprep.mubr.f32.mxu0 0.0
        %677 = vmatmul.mubr.f32.gmra.mrb[0].mxu0 %v599
        %v678 = vpop.f32.mrb[0].mxu0
        %v679 = vadd.f32 %v583, %v678
        %v680 = vpop.f32.mrb[0].mxu0
        %681 = vmatprep.mubr.f32.mxu0 0.0
        %682 = vmatmul.mubr.f32.gmra.mrb[0].mxu0 %v602
        %v683 = vpop.f32.mrb[0].mxu0
        %v684 = vadd.f32 %v588, %v683
        %v685 = vpop.f32.mrb[0].mxu0
        %686 = vmatprep.mubr.f32.mxu0 0.0
        %687 = vmatmul.mubr.f32.gmra.mrb[0].mxu0 %v605
        %v688 = vpop.f32.mrb[0].mxu0
        %v689 = vadd.f32 %v593, %v688
        %v690 = vpop.f32.mrb[0].mxu0
        %691 = vdwg.mxu0
        %v692 = vtanh.pop %v674
        %v693 = vtanh.pop %v679
        %v694 = vtanh.pop %v684
        %v695 = vtanh.pop %v689
        %s696 = scalar_lea.vmem %s2, 96
        %v697 = vld [vmem:[%s696] sm:$0xff]
        %v698 = vld [vmem:[%s696 + $0x8] sm:$0xff]
        %v699 = vld [vmem:[%s696 + $0x10] sm:$0xff]
        %v700 = vld [vmem:[%s696 + $0x18] sm:$0xff]
        %s701 = scalar_lea.vmem %s3, 96
        %v702 = vld [vmem:[%s701] sm:$0xff]
        %v703 = vld [vmem:[%s701 + $0x8] sm:$0xff]
        %v704 = vld [vmem:[%s701 + $0x10] sm:$0xff]
        %v705 = vld [vmem:[%s701 + $0x18] sm:$0xff]
        %707 = vset.pattern.permute.xlu0 0
        %708 = vperm.xlu0 %707, %v702
        %v709 = vpop.permute.xlu0 %708
        %712 = vset.pattern.permute.xlu0 0
        %713 = vperm.xlu0 %712, %v703
        %v714 = vpop.permute.xlu0 %713
        %717 = vset.pattern.permute.xlu0 0
        %718 = vperm.xlu0 %717, %v704
        %v719 = vpop.permute.xlu0 %718
        %722 = vset.pattern.permute.xlu0 0
        %723 = vperm.xlu0 %722, %v705
        %v724 = vpop.permute.xlu0 %723
        %v727 = vsel %vm332, %v697, 0
        %v730 = vsel %vm332, %v698, 0
        %v733 = vsel %vm332, %v699, 0
        %v736 = vsel %vm332, %v700, 0
        %738 = vmatprep.subr.mxu0 0.0
        %739 = vmatpush1.msra.mxu0 %v692
        %740 = vmatprep.subr.mxu0 0.0
        %741 = vmatpush1.msra.mxu0 %v693
        %742 = vmatprep.subr.mxu0 0.0
        %743 = vmatpush1.msra.mxu0 %v694
        %744 = vmatprep.subr.mxu0 0.0
        %745 = vmatpush1.msra.mxu0 %v695
        %746 = vmatprep.subr.mxu0 0.0
        %747 = vmatpush1.msra.mxu0 0.0
        %748 = vmatprep.subr.mxu0 0.0
        %749 = vmatpush1.msra.mxu0 0.0
        %750 = vmatprep.subr.mxu0 0.0
        %751 = vmatpush1.msra.mxu0 0.0
        %752 = vmatprep.subr.mxu0 0.0
        %753 = vmatpush1.msra.mxu0 0.0
        %754 = vmatprep.subr.mxu0 0.0
        %755 = vmatpush1.msra.mxu0 0.0
        %756 = vmatprep.subr.mxu0 0.0
        %757 = vmatpush1.msra.mxu0 0.0
        %758 = vmatprep.subr.mxu0 0.0
        %759 = vmatpush1.msra.mxu0 0.0
        %760 = vmatprep.subr.mxu0 0.0
        %761 = vmatpush1.msra.mxu0 0.0
        %762 = vmatprep.subr.mxu0 0.0
        %763 = vmatpush1.msra.mxu0 0.0
        %764 = vmatprep.subr.mxu0 0.0
        %765 = vmatpush1.msra.mxu0 0.0
        %766 = vmatprep.subr.mxu0 0.0
        %767 = vmatpush1.msra.mxu0 0.0
        %768 = vmatprep.subr.mxu0 0.0
        %769 = vmatpush1.msra.mxu0 0.0
        %770 = vmatprep.subr.mxu0 0.0
        %771 = vmatpush1.msra.mxu0 0.0
        %772 = vmatprep.subr.mxu0 0.0
        %773 = vmatpush1.msra.mxu0 0.0
        %774 = vmatprep.subr.mxu0 0.0
        %775 = vmatpush1.msra.mxu0 0.0
        %776 = vmatprep.subr.mxu0 0.0
        %777 = vmatpush1.msra.mxu0 0.0
        %778 = vmatprep.subr.mxu0 0.0
        %779 = vmatpush1.msra.mxu0 0.0
        %780 = vmatprep.subr.mxu0 0.0
        %781 = vmatpush1.msra.mxu0 0.0
        %782 = vmatprep.subr.mxu0 0.0
        %783 = vmatpush1.msra.mxu0 0.0
        %784 = vmatprep.subr.mxu0 0.0
        %785 = vmatpush1.msra.mxu0 0.0
        %786 = vmatprep.subr.mxu0 0.0
        %787 = vmatpush1.msra.mxu0 0.0
        %788 = vmatprep.subr.mxu0 0.0
        %789 = vmatpush1.msra.mxu0 0.0
        %790 = vmatprep.subr.mxu0 0.0
        %791 = vmatpush1.msra.mxu0 0.0
        %792 = vmatprep.subr.mxu0 0.0
        %793 = vmatpush1.msra.mxu0 0.0
        %794 = vmatprep.subr.mxu0 0.0
        %795 = vmatpush1.msra.mxu0 0.0
        %796 = vmatprep.subr.mxu0 0.0
        %797 = vmatpush1.msra.mxu0 0.0
        %798 = vmatprep.subr.mxu0 0.0
        %799 = vmatpush1.msra.mxu0 0.0
        %800 = vmatprep.subr.mxu0 0.0
        %801 = vmatpush1.msra.mxu0 0.0
        %802 = vmatprep.mubr.f32.mxu0 0.0
        %803 = vmatmul.mubr.f32.gmra.mrb[0].mxu0 %v727
        %v804 = vpop.f32.mrb[0].mxu0
        %v805 = vadd.f32 %v709, %v804
        %v806 = vpop.f32.mrb[0].mxu0
        %807 = vmatprep.mubr.f32.mxu0 0.0
        %808 = vmatmul.mubr.f32.gmra.mrb[0].mxu0 %v730
        %v809 = vpop.f32.mrb[0].mxu0
        %v810 = vadd.f32 %v714, %v809
        %v811 = vpop.f32.mrb[0].mxu0
        %812 = vmatprep.mubr.f32.mxu0 0.0
        %813 = vmatmul.mubr.f32.gmra.mrb[0].mxu0 %v733
        %v814 = vpop.f32.mrb[0].mxu0
        %v815 = vadd.f32 %v719, %v814
        %v816 = vpop.f32.mrb[0].mxu0
        %817 = vmatprep.mubr.f32.mxu0 0.0
        %818 = vmatmul.mubr.f32.gmra.mrb[0].mxu0 %v736
        %v819 = vpop.f32.mrb[0].mxu0
        %v820 = vadd.f32 %v724, %v819
        %v821 = vpop.f32.mrb[0].mxu0
        %822 = vdwg.mxu0
        %v823 = vtanh.pop %v805
        %v824 = vtanh.pop %v810
        %v825 = vtanh.pop %v815
        %v826 = vtanh.pop %v820
        %v827 = vld [vmem:[%s4] sm:$0x1]
        %v828 = vld [vmem:[#allocation2] sm:$0x1]
        %830 = vset.pattern.permute.xlu0 0
        %831 = vperm.xlu0 %830, %v828
        %v832 = vpop.permute.xlu0 %831
        %v834 = vlaneseq
        %v835 = vshrl.u32 %v834, 7
        %v836 = vsub.s32 0, %v835
        %v837 = vrot.slane %v832, %v836
        %v839 = vsel %vm332, %v827, 0
        %841 = vmatprep.subr.mxu0 0.0
        %842 = vmatpush1.msra.mxu0 %v823
        %843 = vmatprep.subr.mxu0 0.0
        %844 = vmatpush1.msra.mxu0 %v824
        %845 = vmatprep.subr.mxu0 0.0
        %846 = vmatpush1.msra.mxu0 %v825
        %847 = vmatprep.subr.mxu0 0.0
        %848 = vmatpush1.msra.mxu0 %v826
        %849 = vmatprep.subr.mxu0 0.0
        %850 = vmatpush1.msra.mxu0 0.0
        %851 = vmatprep.subr.mxu0 0.0
        %852 = vmatpush1.msra.mxu0 0.0
        %853 = vmatprep.subr.mxu0 0.0
        %854 = vmatpush1.msra.mxu0 0.0
        %855 = vmatprep.subr.mxu0 0.0
        %856 = vmatpush1.msra.mxu0 0.0
        %857 = vmatprep.subr.mxu0 0.0
        %858 = vmatpush1.msra.mxu0 0.0
        %859 = vmatprep.subr.mxu0 0.0
        %860 = vmatpush1.msra.mxu0 0.0
        %861 = vmatprep.subr.mxu0 0.0
        %862 = vmatpush1.msra.mxu0 0.0
        %863 = vmatprep.subr.mxu0 0.0
        %864 = vmatpush1.msra.mxu0 0.0
        %865 = vmatprep.subr.mxu0 0.0
        %866 = vmatpush1.msra.mxu0 0.0
        %867 = vmatprep.subr.mxu0 0.0
        %868 = vmatpush1.msra.mxu0 0.0
        %869 = vmatprep.subr.mxu0 0.0
        %870 = vmatpush1.msra.mxu0 0.0
        %871 = vmatprep.subr.mxu0 0.0
        %872 = vmatpush1.msra.mxu0 0.0
        %873 = vmatprep.subr.mxu0 0.0
        %874 = vmatpush1.msra.mxu0 0.0
        %875 = vmatprep.subr.mxu0 0.0
        %876 = vmatpush1.msra.mxu0 0.0
        %877 = vmatprep.subr.mxu0 0.0
        %878 = vmatpush1.msra.mxu0 0.0
        %879 = vmatprep.subr.mxu0 0.0
        %880 = vmatpush1.msra.mxu0 0.0
        %881 = vmatprep.subr.mxu0 0.0
        %882 = vmatpush1.msra.mxu0 0.0
        %883 = vmatprep.subr.mxu0 0.0
        %884 = vmatpush1.msra.mxu0 0.0
        %885 = vmatprep.subr.mxu0 0.0
        %886 = vmatpush1.msra.mxu0 0.0
        %887 = vmatprep.subr.mxu0 0.0
        %888 = vmatpush1.msra.mxu0 0.0
        %889 = vmatprep.subr.mxu0 0.0
        %890 = vmatpush1.msra.mxu0 0.0
        %891 = vmatprep.subr.mxu0 0.0
        %892 = vmatpush1.msra.mxu0 0.0
        %893 = vmatprep.subr.mxu0 0.0
        %894 = vmatpush1.msra.mxu0 0.0
        %895 = vmatprep.subr.mxu0 0.0
        %896 = vmatpush1.msra.mxu0 0.0
        %897 = vmatprep.subr.mxu0 0.0
        %898 = vmatpush1.msra.mxu0 0.0
        %899 = vmatprep.subr.mxu0 0.0
        %900 = vmatpush1.msra.mxu0 0.0
        %901 = vmatprep.subr.mxu0 0.0
        %902 = vmatpush1.msra.mxu0 0.0
        %903 = vmatprep.subr.mxu0 0.0
        %904 = vmatpush1.msra.mxu0 0.0
        %905 = vmatprep.mubr.f32.mxu0 0.0
        %906 = vmatmul.mubr.f32.gmra.mrb[0].mxu0 %v839
        %v907 = vpop.f32.mrb[0].mxu0
        %v908 = vadd.f32 %v837, %v907
        %v909 = vpop.f32.mrb[0].mxu0
        %910 = vdwg.mxu0
        %v911 = vtanh.pop %v908
        %912 = vst [vmem:[%s241] sm:$0x1] %v911
        %s913 = sand.u32 %s161, 1
        %s914 = scalar_lea.sflag [#allocation4], %s913
        %s915 = sand.u32 %s161, 1
        %s916 = scalar_lea.vmem [#allocation3], %s915
        // Predicated region
        $region45: #{tpu_custom_call.1} parent=43 // pred_check
          %p917 = pneg %p171
        $region46: #{tpu_custom_call.1} parent=43 // pred_check_branch
          %919 = sbr.rel (%p917) target = $region48
        $region47: #{tpu_custom_call.1} parent=43 // pred_region
          %s921 = ssub.s32 16, 16
          %922 = vsyncadd %s914, %s921
          %s923 = smul.addr %s22, 16
          %s924 = scalar_lea.hbm %s6, %s923
          %s926 = sshll.u32 %s916, 4
          %s927 = int_to_ptr.vmem [resolvable:$true] %s926
          %929 = dma.vmem_to_hbm [thread:$0]  %s927, 16, %s924, %s914
        $region48: #{tpu_custom_call.1} parent=43 // pred_fallthru
          _
      $region44: #{tpu_custom_call.1} parent=5 // pred_fallthru
        _
      %p930 = scmp.le.s32.totalorder 2, %s17
      // Predicated region
      $region49: #{tpu_custom_call.1} parent=5 // pred_check
        %p931 = pneg %p930
      $region50: #{tpu_custom_call.1} parent=5 // pred_check_branch
        %933 = sbr.rel (%p931) target = $region52
      $region51: #{tpu_custom_call.1} parent=5 // pred_region
        %s934 = ssub.s32 %s17, 2
        // Predicated region
        $region53: #{tpu_custom_call.1} parent=51 // pred_check
          %p935 = pneg %p177
        $region54: #{tpu_custom_call.1} parent=51 // pred_check_branch
          %937 = sbr.rel (%p935) target = $region56
        $region55: #{tpu_custom_call.1} parent=51 // pred_region
          %s938 = sand.u32 %s162, 1
          %s939 = scalar_lea.sflag [#allocation4], %s938
          %s940 = sand.u32 %s162, 1
          %s941 = scalar_lea.vmem [#allocation3], %s940
          %942 = dma.done %s939, 16
        $region56: #{tpu_custom_call.1} parent=51 // pred_fallthru
          _
      $region52: #{tpu_custom_call.1} parent=5 // pred_fallthru
        _
    $region6: #{tpu_custom_call.1} parent=1 // loop_footer
      %s21 = sadd.s32 1, %s17
    $region7: #{tpu_custom_call.1} parent=1 // loop_footer_branch
      %16 = sbr.rel target = $region3
    $region8: #{tpu_custom_call.1} parent=1 // loop_exit
      _
    %943 = vsyncpa [#allocation4], 1
    %s944 = scalar_lea.sflag [#allocation4], 1
    %945 = vsyncpa %s944, 1

</llo_original>
